<compile_context>
chip_gen: v7x
topology: tpu7x:2x2x1
jax: 0.10.0
libtpu: 0.0.40
codegen_flags: <defaults>
</compile_context>

<pallas_src>
import functools

import jax
import jax.numpy as jnp
from jax.experimental import pallas as pl
from jax.experimental.pallas import tpu as pltpu


MIN_GRID_STEPS = 4     # >= 2 needed to shard the parallel batch axis across TCs
MAX_BLOCK_M = 1024     # amortizes ~0.35 us per-step overhead on v5e/v6e


def _round_up(v: int, m: int) -> int:
    return -(-v // m) * m


def _cdiv(a: int, b: int) -> int:
    return -(-a // b)


def _vmem_budget_bytes() -> int:
    """Usable scoped-VMEM budget for this chip generation (with headroom)."""
    cap = 64 * 1024 * 1024  # conservative fallback: fits v7x's 64 MiB
    try:
        cap = int(pltpu.get_tpu_info().vmem_capacity_bytes)
    except Exception:
        pass
    # 128 MiB (v5e/v6e) -> ~104 MiB budget; 64 MiB (v7x) -> ~40 MiB budget.
    return max(cap - 24 * 1024 * 1024, cap // 2)


def _feature_granularity() -> int:
    """256 keeps the 2x256x256 MXUs (v6e/v7x) full; 128 suffices on v5e."""
    try:
        kind = jax.devices()[0].device_kind.lower()
    except Exception:
        return 128
    if "v6" in kind or "7" in kind:
        return 256
    return 128


def mlp_kernel(x_ref, w1_ref, b1_ref, w2_ref, b2_ref, o_ref):
    # fc1: bf16 operands on the MXU with f32 accumulation.  x is streamed as
    # f32 and cast here (the cast rides a free VPU slot under the MXU push).
    x = x_ref[...].astype(jnp.bfloat16)
    h = jnp.dot(x, w1_ref[...], preferred_element_type=jnp.float32)
    # f32 epilogue (safe on v5e: no bf16 VALU): bias broadcast + ReLU.
    h = jnp.maximum(h + b1_ref[...], 0.0)
    # fc2: cast activation back to bf16 for the fast MXU path, accumulate f32.
    y = jnp.dot(h.astype(jnp.bfloat16), w2_ref[...],
                preferred_element_type=jnp.float32)
    o_ref[...] = (y + b2_ref[...]).astype(o_ref.dtype)


def prepare_mlp_params(w1, b1, w2, b2, *, feature_gran=None):
    """Pad + cast the nn.Linear parameters once (outside the per-step path).

    w1: [In, H], b1: [H], w2: [H, Out], b2: [Out]  (weights pre-transposed
    relative to PyTorch's [out, in] layout so the kernel computes x @ W).
    """
    if feature_gran is None:
        feature_gran = _feature_granularity()
    In, H = w1.shape
    Out = w2.shape[1]
    In_p = _round_up(In, feature_gran)
    H_p = _round_up(H, feature_gran)
    Out_p = _round_up(Out, feature_gran)

    bf16, f32 = jnp.bfloat16, jnp.float32
    # Zero padding contributes exactly 0 to every f32 accumulation.
    w1_p = jnp.zeros((In_p, H_p), bf16).at[:In, :H].set(w1.astype(bf16))
    w2_p = jnp.zeros((H_p, Out_p), bf16).at[:H, :Out].set(w2.astype(bf16))
    b1_p = jnp.zeros((1, H_p), f32).at[0, :H].set(b1.astype(f32))
    b2_p = jnp.zeros((1, Out_p), f32).at[0, :Out].set(b2.astype(f32))
    return dict(w1=w1_p, b1=b1_p, w2=w2_p, b2=b2_p, dims=(In, H, Out))


def _per_row_vmem_bytes(In_p: int, H_p: int, Out_p: int) -> int:
    # Per batch-row VMEM: double-buffered f32 x tile + f32 out tile, plus
    # in-kernel temps (bf16 x copy, f32 h, bf16 h; f32 y reuses the out tile
    # estimate conservatively counted in the Out term).
    return In_p * (2 * 4 + 2) + Out_p * (2 * 4 + 4) + H_p * (4 + 2)


def _pick_tm(B, In_p, H_p, Out_p, weight_bytes, vmem_budget):
    per_row = _per_row_vmem_bytes(In_p, H_p, Out_p)
    residual = max(vmem_budget - weight_bytes, 0)
    tm_vmem = max(((residual // max(per_row, 1)) // 16) * 16, 16)
    # Ensure >= MIN_GRID_STEPS grid steps when B is large enough (2 TCs on v7x
    # + DMA/compute overlap everywhere); tm is a multiple of 16 (bf16 packing).
    tm_steps = _round_up(_cdiv(B, MIN_GRID_STEPS), 16)
    return max(16, min(MAX_BLOCK_M, tm_vmem, tm_steps))


@functools.partial(
    jax.jit,
    static_argnames=("tm", "vmem_limit", "single_buffer_weights", "out_dtype"))
def _mlp_pallas(x, w1_p, b1_p, w2_p, b2_p, *, tm, vmem_limit,
                single_buffer_weights, out_dtype):
    B, In = x.shape
    In_p, H_p = w1_p.shape
    Out_p = w2_p.shape[1]
    B_p = _round_up(B, tm)

    x = x.astype(jnp.float32)
    if (B_p, In_p) != (B, In):
        # Only pad when actually needed; otherwise x streams straight through.
        x = jnp.pad(x, ((0, B_p - B), (0, In_p - In)))

    def resident(shape):
        # Constant index_map: block never changes -> VMEM-resident operand.
        idx = lambda i, _n=len(shape): (0,) * _n
        if single_buffer_weights:
            return pl.BlockSpec(shape, idx, pipeline_mode=pl.Buffered(1))
        return pl.BlockSpec(shape, idx)

    grid = (B_p // tm,)
    return pl.pallas_call(
        mlp_kernel,
        out_shape=jax.ShapeDtypeStruct((B_p, Out_p), out_dtype),
        grid=grid,
        in_specs=[
            pl.BlockSpec((tm, In_p), lambda i: (i, 0)),   # x tile (pipelined)
            resident((In_p, H_p)),                        # w1 (VMEM-resident)
            resident((1, H_p)),                           # b1
            resident((H_p, Out_p)),                       # w2
            resident((1, Out_p)),                         # b2
        ],
        out_specs=pl.BlockSpec((tm, Out_p), lambda i: (i, 0)),
        compiler_params=pltpu.CompilerParams(
            dimension_semantics=("parallel",),
            vmem_limit_bytes=vmem_limit,
        ),
    )(x, w1_p, b1_p, w2_p, b2_p)


def mlp_forward(x, params, *, out_dtype=jnp.float32):
    """x: [B, In] -> [B, Out] (out_dtype). Matches MLP.forward numerically up
    to bf16-operand / f32-accumulate matmul precision."""
    In, H, Out = params["dims"]
    w1_p, b1_p, w2_p, b2_p = params["w1"], params["b1"], params["w2"], params["b2"]
    B = x.shape[0]
    In_p, H_p = w1_p.shape
    Out_p = w2_p.shape[1]

    # Single-buffered resident footprint: bf16 weights + f32 biases.
    weight_bytes = (In_p * H_p + H_p * Out_p) * 2 + (H_p + Out_p) * 4
    vmem_budget = _vmem_budget_bytes()
    tm = _pick_tm(B, In_p, H_p, Out_p, weight_bytes, vmem_budget)
    # TODO(synk): if weight_bytes alone exceeds vmem_budget (very large
    # In/H/Out), stream the weights with a trailing "arbitrary" K/N grid axis
    # and a pl.when-initialized f32 accumulator instead of whole residency.

    need = weight_bytes + tm * _per_row_vmem_bytes(In_p, H_p, Out_p)
    vmem_limit = int(min(max(int(1.5 * need), 16 * 1024 * 1024), vmem_budget))

    args = (x, w1_p, b1_p, w2_p, b2_p)
    kwargs = dict(tm=tm, vmem_limit=vmem_limit, out_dtype=out_dtype)
    try:
        out_p = _mlp_pallas(*args, single_buffer_weights=True, **kwargs)
    except Exception:
        # Fallback for JAX versions that reject pipeline_mode=pl.Buffered(1)
        # on a pallas_call BlockSpec.
        out_p = _mlp_pallas(*args, single_buffer_weights=False, **kwargs)

    return out_p[:B, :Out]


# ----------------------------- references ----------------------------------

def mlp_reference_f32(x, w1, b1, w2, b2):
    h = jnp.maximum(x @ w1 + b1, 0.0)
    return h @ w2 + b2


def mlp_reference_bf16(x, w1, b1, w2, b2):
    # Matches the kernel's numerics: bf16 operands, f32 accumulation.
    xb = x.astype(jnp.bfloat16)
    w1b = w1.astype(jnp.bfloat16)
    w2b = w2.astype(jnp.bfloat16)
    h = jnp.dot(xb, w1b, preferred_element_type=jnp.float32) + b1
    h = jnp.maximum(h, 0.0)
    return jnp.dot(h.astype(jnp.bfloat16), w2b,
                   preferred_element_type=jnp.float32) + b2


if __name__ == "__main__":
    # Small shapes implied by MLP(input_size, hidden_size, output_size).
    batch, input_size, hidden_size, output_size = 4, 16, 32, 8

    key = jax.random.PRNGKey(0)
    kx, k1, k2, k3, k4 = jax.random.split(key, 5)

    x = jax.random.normal(kx, (batch, input_size), dtype=jnp.float32)

    # Deterministic nn.Linear-style init (uniform in +/- 1/sqrt(fan_in)),
    # weights stored pre-transposed as [in, out].
    bound1 = 1.0 / jnp.sqrt(jnp.float32(input_size))
    w1 = jax.random.uniform(k1, (input_size, hidden_size), jnp.float32, -bound1, bound1)
    b1 = jax.random.uniform(k2, (hidden_size,), jnp.float32, -bound1, bound1)
    bound2 = 1.0 / jnp.sqrt(jnp.float32(hidden_size))
    w2 = jax.random.uniform(k3, (hidden_size, output_size), jnp.float32, -bound2, bound2)
    b2 = jax.random.uniform(k4, (output_size,), jnp.float32, -bound2, bound2)

    # Pad + cast parameters ONCE (outside the per-step path).
    params = prepare_mlp_params(w1, b1, w2, b2)

    out = mlp_forward(x, params)
    out = jax.block_until_ready(out)
    assert out.shape == (batch, output_size)

    # Tight check vs. a numerics-matched (bf16 matmul, f32 accum) reference,
    # loose check vs. the pure-f32 PyTorch-equivalent reference.
    ref_bf16 = mlp_reference_bf16(x, w1, b1, w2, b2)
    ref_f32 = mlp_reference_f32(x, w1, b1, w2, b2)
    assert jnp.allclose(out, ref_bf16, atol=1e-3, rtol=1e-3), "mismatch vs bf16 reference"
    assert jnp.allclose(out, ref_f32, atol=5e-2, rtol=5e-2), "mismatch vs f32 reference"

    print("KERNEL_OK")
</pallas_src>

<mosaic_0001>
module attributes {stable_mosaic.version = 11 : i64} {
  func.func @mlp_kernel(%arg0: i32, %arg1: memref<16x128xf32, #tpu.memory_space<vmem>>, %arg2: memref<128x128xbf16, #tpu.memory_space<vmem>>, %arg3: memref<1x128xf32, #tpu.memory_space<vmem>>, %arg4: memref<128x128xbf16, #tpu.memory_space<vmem>>, %arg5: memref<1x128xf32, #tpu.memory_space<vmem>>, %arg6: memref<16x128xf32, #tpu.memory_space<vmem>>) attributes {dimension_semantics = [#tpu.dimension_semantics<parallel>], iteration_bounds = array<i64: 1>, scalar_prefetch = 0 : i64, scratch_operands = 0 : i64, tpu.core_type = #tpu.core_type<tc>, window_params = [{transform_indices = @transform_0, window_bounds = array<i64: 16, 128>}, {pipeline_mode = #tpu.pipeline_mode<synchronous>, transform_indices = @transform_1, window_bounds = array<i64: 128, 128>}, {pipeline_mode = #tpu.pipeline_mode<synchronous>, transform_indices = @transform_2, window_bounds = array<i64: 1, 128>}, {pipeline_mode = #tpu.pipeline_mode<synchronous>, transform_indices = @transform_3, window_bounds = array<i64: 128, 128>}, {pipeline_mode = #tpu.pipeline_mode<synchronous>, transform_indices = @transform_4, window_bounds = array<i64: 1, 128>}, {transform_indices = @transform_5, window_bounds = array<i64: 16, 128>}]} {
    %c0 = arith.constant 0 : index
    %c0_0 = arith.constant 0 : index
    %0 = vector.load %arg1[%c0, %c0_0] : memref<16x128xf32, #tpu.memory_space<vmem>>, vector<16x128xf32>
    %1 = arith.truncf %0 : vector<16x128xf32> to vector<16x128xbf16>
    %c0_1 = arith.constant 0 : index
    %c0_2 = arith.constant 0 : index
    %2 = vector.load %arg2[%c0_1, %c0_2] : memref<128x128xbf16, #tpu.memory_space<vmem>>, vector<128x128xbf16>
    %cst = arith.constant dense<0.000000e+00> : vector<16x128xf32>
    %3 = tpu.matmul %1, %2, %cst {dimension_numbers = #tpu.dot_dimension_numbers<[1], [0], [0], [1], [0, 0, 1, 1], [], []>} : vector<16x128xbf16>, vector<128x128xbf16>, vector<16x128xf32> -> vector<16x128xf32>
    %c0_3 = arith.constant 0 : index
    %c0_4 = arith.constant 0 : index
    %4 = vector.load %arg3[%c0_3, %c0_4] : memref<1x128xf32, #tpu.memory_space<vmem>>, vector<1x128xf32>
    %5 = vector.broadcast %4 : vector<1x128xf32> to vector<16x128xf32>
    %6 = arith.addf %3, %5 : vector<16x128xf32>
    %cst_5 = arith.constant 0.000000e+00 : f32
    %7 = vector.broadcast %cst_5 : f32 to vector<16x128xf32>
    %8 = arith.maximumf %6, %7 : vector<16x128xf32>
    %9 = arith.truncf %8 : vector<16x128xf32> to vector<16x128xbf16>
    %c0_6 = arith.constant 0 : index
    %c0_7 = arith.constant 0 : index
    %10 = vector.load %arg4[%c0_6, %c0_7] : memref<128x128xbf16, #tpu.memory_space<vmem>>, vector<128x128xbf16>
    %cst_8 = arith.constant dense<0.000000e+00> : vector<16x128xf32>
    %11 = tpu.matmul %9, %10, %cst_8 {dimension_numbers = #tpu.dot_dimension_numbers<[1], [0], [0], [1], [0, 0, 1, 1], [], []>} : vector<16x128xbf16>, vector<128x128xbf16>, vector<16x128xf32> -> vector<16x128xf32>
    %c0_9 = arith.constant 0 : index
    %c0_10 = arith.constant 0 : index
    %12 = vector.load %arg5[%c0_9, %c0_10] : memref<1x128xf32, #tpu.memory_space<vmem>>, vector<1x128xf32>
    %13 = vector.broadcast %12 : vector<1x128xf32> to vector<16x128xf32>
    %14 = arith.addf %11, %13 : vector<16x128xf32>
    %c0_11 = arith.constant 0 : index
    %c0_12 = arith.constant 0 : index
    %15 = vector.load %arg6[%c0_11, %c0_12] : memref<16x128xf32, #tpu.memory_space<vmem>>, vector<16x128xf32>
    tpu.vector_store %arg6[%c0_11, %c0_12], %14 {strides = array<i32>} : memref<16x128xf32, #tpu.memory_space<vmem>>, vector<16x128xf32>,
    return
  }
  func.func @transform_0(%arg0: i32) -> (i32, i32) {
    %c0_i32 = arith.constant 0 : i32
    %c0_i32_0 = arith.constant 0 : i32
    return %arg0, %c0_i32 : i32, i32
  }
  func.func @transform_1(%arg0: i32) -> (i32, i32) {
    %c0_i32 = arith.constant 0 : i32
    %c0_i32_0 = arith.constant 0 : i32
    %c0_i32_1 = arith.constant 0 : i32
    return %c0_i32, %c0_i32_0 : i32, i32
  }
  func.func @transform_2(%arg0: i32) -> (i32, i32) {
    %c0_i32 = arith.constant 0 : i32
    %c0_i32_0 = arith.constant 0 : i32
    %c0_i32_1 = arith.constant 0 : i32
    return %c0_i32, %c0_i32_0 : i32, i32
  }
  func.func @transform_3(%arg0: i32) -> (i32, i32) {
    %c0_i32 = arith.constant 0 : i32
    %c0_i32_0 = arith.constant 0 : i32
    %c0_i32_1 = arith.constant 0 : i32
    return %c0_i32, %c0_i32_0 : i32, i32
  }
  func.func @transform_4(%arg0: i32) -> (i32, i32) {
    %c0_i32 = arith.constant 0 : i32
    %c0_i32_0 = arith.constant 0 : i32
    %c0_i32_1 = arith.constant 0 : i32
    return %c0_i32, %c0_i32_0 : i32, i32
  }
  func.func @transform_5(%arg0: i32) -> (i32, i32) {
    %c0_i32 = arith.constant 0 : i32
    %c0_i32_0 = arith.constant 0 : i32
    return %arg0, %c0_i32 : i32, i32
  }
}

module attributes {stable_mosaic.version = 11 : i64} {
  func.func @mlp_kernel(%arg0: i32, %arg1: memref<16x128xf32, #tpu.memory_space<vmem>>, %arg2: memref<128x128xbf16, #tpu.memory_space<vmem>>, %arg3: memref<1x128xf32, #tpu.memory_space<vmem>>, %arg4: memref<128x128xbf16, #tpu.memory_space<vmem>>, %arg5: memref<1x128xf32, #tpu.memory_space<vmem>>, %arg6: memref<16x128xf32, #tpu.memory_space<vmem>>) attributes {dimension_semantics = [#tpu.dimension_semantics<parallel>], iteration_bounds = array<i64: 1>, scalar_prefetch = 0 : i64, scratch_operands = 0 : i64, tpu.core_type = #tpu.core_type<tc>, window_params = [{transform_indices = @transform_0, window_bounds = array<i64: 16, 128>}, {pipeline_mode = #tpu.pipeline_mode<synchronous>, transform_indices = @transform_1, window_bounds = array<i64: 128, 128>}, {pipeline_mode = #tpu.pipeline_mode<synchronous>, transform_indices = @transform_2, window_bounds = array<i64: 1, 128>}, {pipeline_mode = #tpu.pipeline_mode<synchronous>, transform_indices = @transform_3, window_bounds = array<i64: 128, 128>}, {pipeline_mode = #tpu.pipeline_mode<synchronous>, transform_indices = @transform_4, window_bounds = array<i64: 1, 128>}, {transform_indices = @transform_5, window_bounds = array<i64: 16, 128>}]} {
    %c0 = arith.constant 0 : index
    %c0_0 = arith.constant 0 : index
    %0 = vector.load %arg1[%c0, %c0_0] : memref<16x128xf32, #tpu.memory_space<vmem>>, vector<16x128xf32>
    %1 = arith.truncf %0 : vector<16x128xf32> to vector<16x128xbf16>
    %c0_1 = arith.constant 0 : index
    %c0_2 = arith.constant 0 : index
    %2 = vector.load %arg2[%c0_1, %c0_2] : memref<128x128xbf16, #tpu.memory_space<vmem>>, vector<128x128xbf16>
    %cst = arith.constant dense<0.000000e+00> : vector<16x128xf32>
    %3 = tpu.matmul %1, %2, %cst {dimension_numbers = #tpu.dot_dimension_numbers<[1], [0], [0], [1], [0, 0, 1, 1], [], []>} : vector<16x128xbf16>, vector<128x128xbf16>, vector<16x128xf32> -> vector<16x128xf32>
    %c0_3 = arith.constant 0 : index
    %c0_4 = arith.constant 0 : index
    %4 = vector.load %arg3[%c0_3, %c0_4] : memref<1x128xf32, #tpu.memory_space<vmem>>, vector<1x128xf32>
    %5 = vector.broadcast %4 : vector<1x128xf32> to vector<16x128xf32>
    %6 = arith.addf %3, %5 : vector<16x128xf32>
    %cst_5 = arith.constant 0.000000e+00 : f32
    %7 = vector.broadcast %cst_5 : f32 to vector<16x128xf32>
    %8 = arith.maximumf %6, %7 : vector<16x128xf32>
    %9 = arith.truncf %8 : vector<16x128xf32> to vector<16x128xbf16>
    %c0_6 = arith.constant 0 : index
    %c0_7 = arith.constant 0 : index
    %10 = vector.load %arg4[%c0_6, %c0_7] : memref<128x128xbf16, #tpu.memory_space<vmem>>, vector<128x128xbf16>
    %cst_8 = arith.constant dense<0.000000e+00> : vector<16x128xf32>
    %11 = tpu.matmul %9, %10, %cst_8 {dimension_numbers = #tpu.dot_dimension_numbers<[1], [0], [0], [1], [0, 0, 1, 1], [], []>} : vector<16x128xbf16>, vector<128x128xbf16>, vector<16x128xf32> -> vector<16x128xf32>
    %c0_9 = arith.constant 0 : index
    %c0_10 = arith.constant 0 : index
    %12 = vector.load %arg5[%c0_9, %c0_10] : memref<1x128xf32, #tpu.memory_space<vmem>>, vector<1x128xf32>
    %13 = vector.broadcast %12 : vector<1x128xf32> to vector<16x128xf32>
    %14 = arith.addf %11, %13 : vector<16x128xf32>
    %c0_11 = arith.constant 0 : index
    %c0_12 = arith.constant 0 : index
    %15 = vector.load %arg6[%c0_11, %c0_12] : memref<16x128xf32, #tpu.memory_space<vmem>>, vector<16x128xf32>
    tpu.vector_store %arg6[%c0_11, %c0_12], %14 {strides = array<i32>} : memref<16x128xf32, #tpu.memory_space<vmem>>, vector<16x128xf32>,
    return
  }
  func.func @transform_0(%arg0: i32) -> (i32, i32) {
    %c0_i32 = arith.constant 0 : i32
    %c0_i32_0 = arith.constant 0 : i32
    return %arg0, %c0_i32 : i32, i32
  }
  func.func @transform_1(%arg0: i32) -> (i32, i32) {
    %c0_i32 = arith.constant 0 : i32
    %c0_i32_0 = arith.constant 0 : i32
    %c0_i32_1 = arith.constant 0 : i32
    return %c0_i32, %c0_i32_0 : i32, i32
  }
  func.func @transform_2(%arg0: i32) -> (i32, i32) {
    %c0_i32 = arith.constant 0 : i32
    %c0_i32_0 = arith.constant 0 : i32
    %c0_i32_1 = arith.constant 0 : i32
    return %c0_i32, %c0_i32_0 : i32, i32
  }
  func.func @transform_3(%arg0: i32) -> (i32, i32) {
    %c0_i32 = arith.constant 0 : i32
    %c0_i32_0 = arith.constant 0 : i32
    %c0_i32_1 = arith.constant 0 : i32
    return %c0_i32, %c0_i32_0 : i32, i32
  }
  func.func @transform_4(%arg0: i32) -> (i32, i32) {
    %c0_i32 = arith.constant 0 : i32
    %c0_i32_0 = arith.constant 0 : i32
    %c0_i32_1 = arith.constant 0 : i32
    return %c0_i32, %c0_i32_0 : i32, i32
  }
  func.func @transform_5(%arg0: i32) -> (i32, i32) {
    %c0_i32 = arith.constant 0 : i32
    %c0_i32_0 = arith.constant 0 : i32
    return %arg0, %c0_i32 : i32, i32
  }
}

</mosaic_0001>

<llo_original>
// kernel: _mlp_pallas.1
$region0: #{_mlp_pallas.1}
  #allocation0 [shape = 'u32[]', space=smem, size = 0x4, offset = 0x4, fixed_abs, tag = 'smem constant byte address 0x4 - core index']
  #allocation1 [shape = 'u32[144,128]{1,0:T(1,128)}', space=vmem, size = 0x12000, scoped, tag = 'internal scratch']
  %s0 = inlined_call_operand.vmem [shape: f32[16,128], index: 0, kind: input, shape index: {}]
  %s1 = inlined_call_operand.hbm [shape: bf16[128,128], index: 1, kind: input, shape index: {}]
  %s2 = inlined_call_operand.vmem [shape: f32[1,128], index: 2, kind: input, shape index: {}]
  %s3 = inlined_call_operand.hbm [shape: bf16[128,128], index: 3, kind: input, shape index: {}]
  %s4 = inlined_call_operand.vmem [shape: f32[1,128], index: 4, kind: input, shape index: {}]
  %s5 = inlined_call_operand.hbm [shape: f32[16,128], index: 5, kind: output, shape index: {}]
  %s6 = sld [smem:[#allocation0]]
  $region38: #{_mlp_pallas.1} parent=0
    _
  %s8 = ssub.s32 1, %s6
  %s9 = scalar_select 0, %s8, %s6
  $region1: #{_mlp_pallas.1} parent=0
    #allocation2 [shape = 'u8[32768]{0}', space=vmem, size = 0x8000, scoped, tag = 'input window, operand 1, single buffered']
    #allocation3 [shape = 's32[1]{0}', space=sflag, size = 0x4, scoped, tag = 'scoped memory for _mlp_pallas.1']
    #allocation4 [shape = 's32[1]{0}', space=sflag, size = 0x4, scoped, tag = 'scoped memory for _mlp_pallas.1']
    #allocation5 [shape = 'u8[32768]{0}', space=vmem, size = 0x8000, scoped, tag = 'input window, operand 3, single buffered']
    #allocation6 [shape = 's32[1]{0}', space=sflag, size = 0x4, scoped, tag = 'scoped memory for _mlp_pallas.1']
    #allocation7 [shape = 'u8[8192]{0}', space=vmem, size = 0x2000, scoped, tag = 'output window, operand 0, single buffered']
    %10 = vsyncpa [#allocation3], 0
    %11 = vsyncpa [#allocation6], 0
    %12 = vsyncpa [#allocation4], 0
    // Predicated region
    $region2: #{_mlp_pallas.1} parent=1 // pred_check
      _
    $region3: #{_mlp_pallas.1} parent=1 // pred_check_branch
      %14 = sbr.rel (0) target = $region5
    $region4: #{_mlp_pallas.1} parent=1 // pred_region
      _
    $region5: #{_mlp_pallas.1} parent=1 // pred_fallthru
      _
    // Predicated region
    $region6: #{_mlp_pallas.1} parent=1 // pred_check
      _
    $region7: #{_mlp_pallas.1} parent=1 // pred_check_branch
      %16 = sbr.rel (0) target = $region9
    $region8: #{_mlp_pallas.1} parent=1 // pred_region
      %s18 = ssub.s32 1024, 1024
      %19 = vsyncadd [#allocation3], %s18
      %s20 = sshll.u32 [#allocation2], 4
      %s21 = int_to_ptr.vmem [resolvable:$true] %s20
      %26 = dma.hbm_to_vmem [thread:$0]  %s1, 1024, %s21, [#allocation3], 64, 64, 4
    $region9: #{_mlp_pallas.1} parent=1 // pred_fallthru
      _
    // Predicated region
    $region10: #{_mlp_pallas.1} parent=1 // pred_check
      _
    $region11: #{_mlp_pallas.1} parent=1 // pred_check_branch
      %28 = sbr.rel (0) target = $region13
    $region12: #{_mlp_pallas.1} parent=1 // pred_region
      _
    $region13: #{_mlp_pallas.1} parent=1 // pred_fallthru
      _
    // Predicated region
    $region14: #{_mlp_pallas.1} parent=1 // pred_check
      _
    $region15: #{_mlp_pallas.1} parent=1 // pred_check_branch
      %30 = sbr.rel (0) target = $region17
    $region16: #{_mlp_pallas.1} parent=1 // pred_region
      %s32 = ssub.s32 1024, 1024
      %33 = vsyncadd [#allocation6], %s32
      %s34 = sshll.u32 [#allocation5], 4
      %s35 = int_to_ptr.vmem [resolvable:$true] %s34
      %40 = dma.hbm_to_vmem [thread:$0]  %s3, 1024, %s35, [#allocation6], 64, 64, 4
    $region17: #{_mlp_pallas.1} parent=1 // pred_fallthru
      _
    // Predicated region
    $region18: #{_mlp_pallas.1} parent=1 // pred_check
      _
    $region19: #{_mlp_pallas.1} parent=1 // pred_check_branch
      %42 = sbr.rel (0) target = $region21
    $region20: #{_mlp_pallas.1} parent=1 // pred_region
      _
    $region21: #{_mlp_pallas.1} parent=1 // pred_fallthru
      _
    // Predicated region
    $region22: #{_mlp_pallas.1} parent=1 // pred_check
      _
    $region23: #{_mlp_pallas.1} parent=1 // pred_check_branch
      %44 = sbr.rel (0) target = $region25
    $region24: #{_mlp_pallas.1} parent=1 // pred_region
      %45 = dma.done [#allocation3], 1024
    $region25: #{_mlp_pallas.1} parent=1 // pred_fallthru
      _
    // Predicated region
    $region26: #{_mlp_pallas.1} parent=1 // pred_check
      _
    $region27: #{_mlp_pallas.1} parent=1 // pred_check_branch
      %47 = sbr.rel (0) target = $region29
    $region28: #{_mlp_pallas.1} parent=1 // pred_region
      %48 = dma.done [#allocation6], 1024
    $region29: #{_mlp_pallas.1} parent=1 // pred_fallthru
      _
    %v50 = vld [vmem:[%s0] sm:$0xff]
    %v51 = vld [vmem:[%s0 + $0x8] sm:$0xff]
    %v52 = vpack.c.bf16 %v51, %v50
    %v53 = vld [vmem:[#allocation2] sm:$0xf]
    %v54 = vld [vmem:[#allocation2 + $0x4] sm:$0xf]
    %v55 = vld [vmem:[#allocation2 + $0x8] sm:$0xf]
    %v56 = vld [vmem:[#allocation2 + $0xc] sm:$0xf]
    %v57 = vld [vmem:[#allocation2 + $0x10] sm:$0xf]
    %v58 = vld [vmem:[#allocation2 + $0x14] sm:$0xf]
    %v59 = vld [vmem:[#allocation2 + $0x18] sm:$0xf]
    %v60 = vld [vmem:[#allocation2 + $0x1c] sm:$0xf]
    %v61 = vld [vmem:[#allocation2 + $0x20] sm:$0xf]
    %v62 = vld [vmem:[#allocation2 + $0x24] sm:$0xf]
    %v63 = vld [vmem:[#allocation2 + $0x28] sm:$0xf]
    %v64 = vld [vmem:[#allocation2 + $0x2c] sm:$0xf]
    %v65 = vld [vmem:[#allocation2 + $0x30] sm:$0xf]
    %v66 = vld [vmem:[#allocation2 + $0x34] sm:$0xf]
    %v67 = vld [vmem:[#allocation2 + $0x38] sm:$0xf]
    %v68 = vld [vmem:[#allocation2 + $0x3c] sm:$0xf]
    %v69 = vld [vmem:[%s2] sm:$0x1]
    %v71 = vlaneseq
    %v72 = vshrl.u32 %v71, 7
    %v73 = vsub.s32 0, %v72
    %v74 = vrot.slane %v69, %v73
    %v92 = vunpack.c.l.b16 %v53
    %v93 = vunpack.c.l.b16 %v54
    %v94 = vunpack.c.l.b16 %v55
    %v95 = vunpack.c.l.b16 %v56
    %v96 = vunpack.c.l.b16 %v57
    %v97 = vunpack.c.l.b16 %v58
    %v98 = vunpack.c.l.b16 %v59
    %v99 = vunpack.c.l.b16 %v60
    %v100 = vunpack.c.l.b16 %v61
    %v101 = vunpack.c.l.b16 %v62
    %v102 = vunpack.c.l.b16 %v63
    %v103 = vunpack.c.l.b16 %v64
    %v104 = vunpack.c.l.b16 %v65
    %v105 = vunpack.c.l.b16 %v66
    %v106 = vunpack.c.l.b16 %v67
    %v107 = vunpack.c.l.b16 %v68
    %v108 = vpack.c.b16 %v93, %v92
    %v109 = vpack.c.b16 %v95, %v94
    %v110 = vpack.c.b16 %v97, %v96
    %v111 = vpack.c.b16 %v99, %v98
    %v112 = vpack.c.b16 %v101, %v100
    %v113 = vpack.c.b16 %v103, %v102
    %v114 = vpack.c.b16 %v105, %v104
    %v115 = vpack.c.b16 %v107, %v106
    %124 = vmatprep.subr.bf16.mxu0 0
    %125 = vmatpush1.bf16.msra.mxu0 %v108
    %126 = vmatprep.subr.bf16.mxu0 0
    %127 = vmatpush1.bf16.msra.mxu0 %v109
    %128 = vmatprep.subr.bf16.mxu0 0
    %129 = vmatpush1.bf16.msra.mxu0 %v110
    %130 = vmatprep.subr.bf16.mxu0 0
    %131 = vmatpush1.bf16.msra.mxu0 %v111
    %132 = vmatprep.subr.bf16.mxu0 0
    %133 = vmatpush1.bf16.msra.mxu0 %v112
    %134 = vmatprep.subr.bf16.mxu0 0
    %135 = vmatpush1.bf16.msra.mxu0 %v113
    %136 = vmatprep.subr.bf16.mxu0 0
    %137 = vmatpush1.bf16.msra.mxu0 %v114
    %138 = vmatprep.subr.bf16.mxu0 0
    %139 = vmatpush1.bf16.msra.mxu0 %v115
    %140 = vmatprep.subr.bf16.mxu0 0
    %141 = vmatpush1.bf16.msra.mxu0 0
    %142 = vmatprep.subr.bf16.mxu0 0
    %143 = vmatpush1.bf16.msra.mxu0 0
    %144 = vmatprep.subr.bf16.mxu0 0
    %145 = vmatpush1.bf16.msra.mxu0 0
    %146 = vmatprep.subr.bf16.mxu0 0
    %147 = vmatpush1.bf16.msra.mxu0 0
    %148 = vmatprep.subr.bf16.mxu0 0
    %149 = vmatpush1.bf16.msra.mxu0 0
    %150 = vmatprep.subr.bf16.mxu0 0
    %151 = vmatpush1.bf16.msra.mxu0 0
    %152 = vmatprep.subr.bf16.mxu0 0
    %153 = vmatpush1.bf16.msra.mxu0 0
    %154 = vmatprep.subr.bf16.mxu0 0
    %155 = vmatpush1.bf16.msra.mxu0 0
    %156 = vmatprep.mubr.bf16.mxu0 0
    %157 = vmatmul.mubr.bf16.gmra.mrb[0].mxu0 %v52
    %v158 = vpop.f32.mrb[0].mxu0
    %v159 = vadd.f32 %v74, %v158
    %v160 = vpop.f32.mrb[0].mxu0
    %v161 = vpop.f32.mrb[0].mxu0
    %v162 = vadd.f32 %v74, %v161
    %v163 = vpop.f32.mrb[0].mxu0
    %164 = vdwg.mxu0
    %v165 = vmax.f32 %v159, 0.0
    %v166 = vmax.f32 %v162, 0.0
    %v167 = vpack.c.bf16 %v166, %v165
    %v168 = vld [vmem:[#allocation5] sm:$0xf]
    %v169 = vld [vmem:[#allocation5 + $0x4] sm:$0xf]
    %v170 = vld [vmem:[#allocation5 + $0x8] sm:$0xf]
    %v171 = vld [vmem:[#allocation5 + $0xc] sm:$0xf]
    %v172 = vld [vmem:[#allocation5 + $0x10] sm:$0xf]
    %v173 = vld [vmem:[#allocation5 + $0x14] sm:$0xf]
    %v174 = vld [vmem:[#allocation5 + $0x18] sm:$0xf]
    %v175 = vld [vmem:[#allocation5 + $0x1c] sm:$0xf]
    %v176 = vld [vmem:[#allocation5 + $0x20] sm:$0xf]
    %v177 = vld [vmem:[#allocation5 + $0x24] sm:$0xf]
    %v178 = vld [vmem:[#allocation5 + $0x28] sm:$0xf]
    %v179 = vld [vmem:[#allocation5 + $0x2c] sm:$0xf]
    %v180 = vld [vmem:[#allocation5 + $0x30] sm:$0xf]
    %v181 = vld [vmem:[#allocation5 + $0x34] sm:$0xf]
    %v182 = vld [vmem:[#allocation5 + $0x38] sm:$0xf]
    %v183 = vld [vmem:[#allocation5 + $0x3c] sm:$0xf]
    %v184 = vld [vmem:[%s4] sm:$0x1]
    %v186 = vlaneseq
    %v187 = vshrl.u32 %v186, 7
    %v188 = vsub.s32 0, %v187
    %v189 = vrot.slane %v184, %v188
    %v207 = vunpack.c.l.b16 %v168
    %v208 = vunpack.c.l.b16 %v169
    %v209 = vunpack.c.l.b16 %v170
    %v210 = vunpack.c.l.b16 %v171
    %v211 = vunpack.c.l.b16 %v172
    %v212 = vunpack.c.l.b16 %v173
    %v213 = vunpack.c.l.b16 %v174
    %v214 = vunpack.c.l.b16 %v175
    %v215 = vunpack.c.l.b16 %v176
    %v216 = vunpack.c.l.b16 %v177
    %v217 = vunpack.c.l.b16 %v178
    %v218 = vunpack.c.l.b16 %v179
    %v219 = vunpack.c.l.b16 %v180
    %v220 = vunpack.c.l.b16 %v181
    %v221 = vunpack.c.l.b16 %v182
    %v222 = vunpack.c.l.b16 %v183
    %v223 = vpack.c.b16 %v208, %v207
    %v224 = vpack.c.b16 %v210, %v209
    %v225 = vpack.c.b16 %v212, %v211
    %v226 = vpack.c.b16 %v214, %v213
    %v227 = vpack.c.b16 %v216, %v215
    %v228 = vpack.c.b16 %v218, %v217
    %v229 = vpack.c.b16 %v220, %v219
    %v230 = vpack.c.b16 %v222, %v221
    %239 = vmatprep.subr.bf16.mxu0 0
    %240 = vmatpush1.bf16.msra.mxu0 %v223
    %241 = vmatprep.subr.bf16.mxu0 0
    %242 = vmatpush1.bf16.msra.mxu0 %v224
    %243 = vmatprep.subr.bf16.mxu0 0
    %244 = vmatpush1.bf16.msra.mxu0 %v225
    %245 = vmatprep.subr.bf16.mxu0 0
    %246 = vmatpush1.bf16.msra.mxu0 %v226
    %247 = vmatprep.subr.bf16.mxu0 0
    %248 = vmatpush1.bf16.msra.mxu0 %v227
    %249 = vmatprep.subr.bf16.mxu0 0
    %250 = vmatpush1.bf16.msra.mxu0 %v228
    %251 = vmatprep.subr.bf16.mxu0 0
    %252 = vmatpush1.bf16.msra.mxu0 %v229
    %253 = vmatprep.subr.bf16.mxu0 0
    %254 = vmatpush1.bf16.msra.mxu0 %v230
    %255 = vmatprep.subr.bf16.mxu0 0
    %256 = vmatpush1.bf16.msra.mxu0 0
    %257 = vmatprep.subr.bf16.mxu0 0
    %258 = vmatpush1.bf16.msra.mxu0 0
    %259 = vmatprep.subr.bf16.mxu0 0
    %260 = vmatpush1.bf16.msra.mxu0 0
    %261 = vmatprep.subr.bf16.mxu0 0
    %262 = vmatpush1.bf16.msra.mxu0 0
    %263 = vmatprep.subr.bf16.mxu0 0
    %264 = vmatpush1.bf16.msra.mxu0 0
    %265 = vmatprep.subr.bf16.mxu0 0
    %266 = vmatpush1.bf16.msra.mxu0 0
    %267 = vmatprep.subr.bf16.mxu0 0
    %268 = vmatpush1.bf16.msra.mxu0 0
    %269 = vmatprep.subr.bf16.mxu0 0
    %270 = vmatpush1.bf16.msra.mxu0 0
    %271 = vmatprep.mubr.bf16.mxu0 0
    %272 = vmatmul.mubr.bf16.gmra.mrb[0].mxu0 %v167
    %v273 = vpop.f32.mrb[0].mxu0
    %v274 = vadd.f32 %v189, %v273
    %v275 = vpop.f32.mrb[0].mxu0
    %v276 = vpop.f32.mrb[0].mxu0
    %v277 = vadd.f32 %v189, %v276
    %v278 = vpop.f32.mrb[0].mxu0
    %279 = vdwg.mxu0
    %280 = vst [vmem:[#allocation7] sm:$0xff] %v274
    %281 = vst [vmem:[#allocation7 + $0x8] sm:$0xff] %v277
    // Predicated region
    $region30: #{_mlp_pallas.1} parent=1 // pred_check
      _
    $region31: #{_mlp_pallas.1} parent=1 // pred_check_branch
      %283 = sbr.rel (0) target = $region33
    $region32: #{_mlp_pallas.1} parent=1 // pred_region
      %s285 = ssub.s32 256, 256
      %286 = vsyncadd [#allocation4], %s285
      %s287 = sshll.u32 [#allocation7], 4
      %s288 = int_to_ptr.vmem [resolvable:$true] %s287
      %293 = dma.vmem_to_hbm [thread:$0]  %s288, 256, %s5, [#allocation4], 128, 128, 8
    $region33: #{_mlp_pallas.1} parent=1 // pred_fallthru
      _
    // Predicated region
    $region34: #{_mlp_pallas.1} parent=1 // pred_check
      _
    $region35: #{_mlp_pallas.1} parent=1 // pred_check_branch
      %295 = sbr.rel (0) target = $region37
    $region36: #{_mlp_pallas.1} parent=1 // pred_region
      %296 = dma.done [#allocation4], 256
    $region37: #{_mlp_pallas.1} parent=1 // pred_fallthru
      _
    %297 = vsyncpa [#allocation3], 1
    %298 = vsyncpa [#allocation6], 1
    %299 = vsyncpa [#allocation4], 1

// kernel: _mlp_pallas.1
$region0: #{_mlp_pallas.1}
  #allocation0 [shape = 'u32[]', space=smem, size = 0x4, offset = 0x4, fixed_abs, tag = 'smem constant byte address 0x4 - core index']
  #allocation1 [shape = 'u32[144,128]{1,0:T(1,128)}', space=vmem, size = 0x12000, scoped, tag = 'internal scratch']
  %s0 = inlined_call_operand.vmem [shape: f32[16,128], index: 0, kind: input, shape index: {}]
  %s1 = inlined_call_operand.hbm [shape: bf16[128,128], index: 1, kind: input, shape index: {}]
  %s2 = inlined_call_operand.vmem [shape: f32[1,128], index: 2, kind: input, shape index: {}]
  %s3 = inlined_call_operand.hbm [shape: bf16[128,128], index: 3, kind: input, shape index: {}]
  %s4 = inlined_call_operand.vmem [shape: f32[1,128], index: 4, kind: input, shape index: {}]
  %s5 = inlined_call_operand.hbm [shape: f32[16,128], index: 5, kind: output, shape index: {}]
  %s6 = sld [smem:[#allocation0]]
  $region38: #{_mlp_pallas.1} parent=0
    _
  %s8 = ssub.s32 1, %s6
  %s9 = scalar_select 0, %s8, %s6
  $region1: #{_mlp_pallas.1} parent=0
    #allocation2 [shape = 'u8[32768]{0}', space=vmem, size = 0x8000, scoped, tag = 'input window, operand 1, single buffered']
    #allocation3 [shape = 's32[1]{0}', space=sflag, size = 0x4, scoped, tag = 'scoped memory for _mlp_pallas.1']
    #allocation4 [shape = 's32[1]{0}', space=sflag, size = 0x4, scoped, tag = 'scoped memory for _mlp_pallas.1']
    #allocation5 [shape = 'u8[32768]{0}', space=vmem, size = 0x8000, scoped, tag = 'input window, operand 3, single buffered']
    #allocation6 [shape = 's32[1]{0}', space=sflag, size = 0x4, scoped, tag = 'scoped memory for _mlp_pallas.1']
    #allocation7 [shape = 'u8[8192]{0}', space=vmem, size = 0x2000, scoped, tag = 'output window, operand 0, single buffered']
    %10 = vsyncpa [#allocation3], 0
    %11 = vsyncpa [#allocation6], 0
    %12 = vsyncpa [#allocation4], 0
    // Predicated region
    $region2: #{_mlp_pallas.1} parent=1 // pred_check
      _
    $region3: #{_mlp_pallas.1} parent=1 // pred_check_branch
      %14 = sbr.rel (0) target = $region5
    $region4: #{_mlp_pallas.1} parent=1 // pred_region
      _
    $region5: #{_mlp_pallas.1} parent=1 // pred_fallthru
      _
    // Predicated region
    $region6: #{_mlp_pallas.1} parent=1 // pred_check
      _
    $region7: #{_mlp_pallas.1} parent=1 // pred_check_branch
      %16 = sbr.rel (0) target = $region9
    $region8: #{_mlp_pallas.1} parent=1 // pred_region
      %s18 = ssub.s32 1024, 1024
      %19 = vsyncadd [#allocation3], %s18
      %s20 = sshll.u32 [#allocation2], 4
      %s21 = int_to_ptr.vmem [resolvable:$true] %s20
      %26 = dma.hbm_to_vmem [thread:$0]  %s1, 1024, %s21, [#allocation3], 64, 64, 4
    $region9: #{_mlp_pallas.1} parent=1 // pred_fallthru
      _
    // Predicated region
    $region10: #{_mlp_pallas.1} parent=1 // pred_check
      _
    $region11: #{_mlp_pallas.1} parent=1 // pred_check_branch
      %28 = sbr.rel (0) target = $region13
    $region12: #{_mlp_pallas.1} parent=1 // pred_region
      _
    $region13: #{_mlp_pallas.1} parent=1 // pred_fallthru
      _
    // Predicated region
    $region14: #{_mlp_pallas.1} parent=1 // pred_check
      _
    $region15: #{_mlp_pallas.1} parent=1 // pred_check_branch
      %30 = sbr.rel (0) target = $region17
    $region16: #{_mlp_pallas.1} parent=1 // pred_region
      %s32 = ssub.s32 1024, 1024
      %33 = vsyncadd [#allocation6], %s32
      %s34 = sshll.u32 [#allocation5], 4
      %s35 = int_to_ptr.vmem [resolvable:$true] %s34
      %40 = dma.hbm_to_vmem [thread:$0]  %s3, 1024, %s35, [#allocation6], 64, 64, 4
    $region17: #{_mlp_pallas.1} parent=1 // pred_fallthru
      _
    // Predicated region
    $region18: #{_mlp_pallas.1} parent=1 // pred_check
      _
    $region19: #{_mlp_pallas.1} parent=1 // pred_check_branch
      %42 = sbr.rel (0) target = $region21
    $region20: #{_mlp_pallas.1} parent=1 // pred_region
      _
    $region21: #{_mlp_pallas.1} parent=1 // pred_fallthru
      _
    // Predicated region
    $region22: #{_mlp_pallas.1} parent=1 // pred_check
      _
    $region23: #{_mlp_pallas.1} parent=1 // pred_check_branch
      %44 = sbr.rel (0) target = $region25
    $region24: #{_mlp_pallas.1} parent=1 // pred_region
      %45 = dma.done [#allocation3], 1024
    $region25: #{_mlp_pallas.1} parent=1 // pred_fallthru
      _
    // Predicated region
    $region26: #{_mlp_pallas.1} parent=1 // pred_check
      _
    $region27: #{_mlp_pallas.1} parent=1 // pred_check_branch
      %47 = sbr.rel (0) target = $region29
    $region28: #{_mlp_pallas.1} parent=1 // pred_region
      %48 = dma.done [#allocation6], 1024
    $region29: #{_mlp_pallas.1} parent=1 // pred_fallthru
      _
    %v50 = vld [vmem:[%s0] sm:$0xff]
    %v51 = vld [vmem:[%s0 + $0x8] sm:$0xff]
    %v52 = vpack.c.bf16 %v51, %v50
    %v53 = vld [vmem:[#allocation2] sm:$0xf]
    %v54 = vld [vmem:[#allocation2 + $0x4] sm:$0xf]
    %v55 = vld [vmem:[#allocation2 + $0x8] sm:$0xf]
    %v56 = vld [vmem:[#allocation2 + $0xc] sm:$0xf]
    %v57 = vld [vmem:[#allocation2 + $0x10] sm:$0xf]
    %v58 = vld [vmem:[#allocation2 + $0x14] sm:$0xf]
    %v59 = vld [vmem:[#allocation2 + $0x18] sm:$0xf]
    %v60 = vld [vmem:[#allocation2 + $0x1c] sm:$0xf]
    %v61 = vld [vmem:[#allocation2 + $0x20] sm:$0xf]
    %v62 = vld [vmem:[#allocation2 + $0x24] sm:$0xf]
    %v63 = vld [vmem:[#allocation2 + $0x28] sm:$0xf]
    %v64 = vld [vmem:[#allocation2 + $0x2c] sm:$0xf]
    %v65 = vld [vmem:[#allocation2 + $0x30] sm:$0xf]
    %v66 = vld [vmem:[#allocation2 + $0x34] sm:$0xf]
    %v67 = vld [vmem:[#allocation2 + $0x38] sm:$0xf]
    %v68 = vld [vmem:[#allocation2 + $0x3c] sm:$0xf]
    %v69 = vld [vmem:[%s2] sm:$0x1]
    %v71 = vlaneseq
    %v72 = vshrl.u32 %v71, 7
    %v73 = vsub.s32 0, %v72
    %v74 = vrot.slane %v69, %v73
    %v92 = vunpack.c.l.b16 %v53
    %v93 = vunpack.c.l.b16 %v54
    %v94 = vunpack.c.l.b16 %v55
    %v95 = vunpack.c.l.b16 %v56
    %v96 = vunpack.c.l.b16 %v57
    %v97 = vunpack.c.l.b16 %v58
    %v98 = vunpack.c.l.b16 %v59
    %v99 = vunpack.c.l.b16 %v60
    %v100 = vunpack.c.l.b16 %v61
    %v101 = vunpack.c.l.b16 %v62
    %v102 = vunpack.c.l.b16 %v63
    %v103 = vunpack.c.l.b16 %v64
    %v104 = vunpack.c.l.b16 %v65
    %v105 = vunpack.c.l.b16 %v66
    %v106 = vunpack.c.l.b16 %v67
    %v107 = vunpack.c.l.b16 %v68
    %v108 = vpack.c.b16 %v93, %v92
    %v109 = vpack.c.b16 %v95, %v94
    %v110 = vpack.c.b16 %v97, %v96
    %v111 = vpack.c.b16 %v99, %v98
    %v112 = vpack.c.b16 %v101, %v100
    %v113 = vpack.c.b16 %v103, %v102
    %v114 = vpack.c.b16 %v105, %v104
    %v115 = vpack.c.b16 %v107, %v106
    %124 = vmatprep.subr.bf16.mxu0 0
    %125 = vmatpush1.bf16.msra.mxu0 %v108
    %126 = vmatprep.subr.bf16.mxu0 0
    %127 = vmatpush1.bf16.msra.mxu0 %v109
    %128 = vmatprep.subr.bf16.mxu0 0
    %129 = vmatpush1.bf16.msra.mxu0 %v110
    %130 = vmatprep.subr.bf16.mxu0 0
    %131 = vmatpush1.bf16.msra.mxu0 %v111
    %132 = vmatprep.subr.bf16.mxu0 0
    %133 = vmatpush1.bf16.msra.mxu0 %v112
    %134 = vmatprep.subr.bf16.mxu0 0
    %135 = vmatpush1.bf16.msra.mxu0 %v113
    %136 = vmatprep.subr.bf16.mxu0 0
    %137 = vmatpush1.bf16.msra.mxu0 %v114
    %138 = vmatprep.subr.bf16.mxu0 0
    %139 = vmatpush1.bf16.msra.mxu0 %v115
    %140 = vmatprep.subr.bf16.mxu0 0
    %141 = vmatpush1.bf16.msra.mxu0 0
    %142 = vmatprep.subr.bf16.mxu0 0
    %143 = vmatpush1.bf16.msra.mxu0 0
    %144 = vmatprep.subr.bf16.mxu0 0
    %145 = vmatpush1.bf16.msra.mxu0 0
    %146 = vmatprep.subr.bf16.mxu0 0
    %147 = vmatpush1.bf16.msra.mxu0 0
    %148 = vmatprep.subr.bf16.mxu0 0
    %149 = vmatpush1.bf16.msra.mxu0 0
    %150 = vmatprep.subr.bf16.mxu0 0
    %151 = vmatpush1.bf16.msra.mxu0 0
    %152 = vmatprep.subr.bf16.mxu0 0
    %153 = vmatpush1.bf16.msra.mxu0 0
    %154 = vmatprep.subr.bf16.mxu0 0
    %155 = vmatpush1.bf16.msra.mxu0 0
    %156 = vmatprep.mubr.bf16.mxu0 0
    %157 = vmatmul.mubr.bf16.gmra.mrb[0].mxu0 %v52
    %v158 = vpop.f32.mrb[0].mxu0
    %v159 = vadd.f32 %v74, %v158
    %v160 = vpop.f32.mrb[0].mxu0
    %v161 = vpop.f32.mrb[0].mxu0
    %v162 = vadd.f32 %v74, %v161
    %v163 = vpop.f32.mrb[0].mxu0
    %164 = vdwg.mxu0
    %v165 = vmax.f32 %v159, 0.0
    %v166 = vmax.f32 %v162, 0.0
    %v167 = vpack.c.bf16 %v166, %v165
    %v168 = vld [vmem:[#allocation5] sm:$0xf]
    %v169 = vld [vmem:[#allocation5 + $0x4] sm:$0xf]
    %v170 = vld [vmem:[#allocation5 + $0x8] sm:$0xf]
    %v171 = vld [vmem:[#allocation5 + $0xc] sm:$0xf]
    %v172 = vld [vmem:[#allocation5 + $0x10] sm:$0xf]
    %v173 = vld [vmem:[#allocation5 + $0x14] sm:$0xf]
    %v174 = vld [vmem:[#allocation5 + $0x18] sm:$0xf]
    %v175 = vld [vmem:[#allocation5 + $0x1c] sm:$0xf]
    %v176 = vld [vmem:[#allocation5 + $0x20] sm:$0xf]
    %v177 = vld [vmem:[#allocation5 + $0x24] sm:$0xf]
    %v178 = vld [vmem:[#allocation5 + $0x28] sm:$0xf]
    %v179 = vld [vmem:[#allocation5 + $0x2c] sm:$0xf]
    %v180 = vld [vmem:[#allocation5 + $0x30] sm:$0xf]
    %v181 = vld [vmem:[#allocation5 + $0x34] sm:$0xf]
    %v182 = vld [vmem:[#allocation5 + $0x38] sm:$0xf]
    %v183 = vld [vmem:[#allocation5 + $0x3c] sm:$0xf]
    %v184 = vld [vmem:[%s4] sm:$0x1]
    %v186 = vlaneseq
    %v187 = vshrl.u32 %v186, 7
    %v188 = vsub.s32 0, %v187
    %v189 = vrot.slane %v184, %v188
    %v207 = vunpack.c.l.b16 %v168
    %v208 = vunpack.c.l.b16 %v169
    %v209 = vunpack.c.l.b16 %v170
    %v210 = vunpack.c.l.b16 %v171
    %v211 = vunpack.c.l.b16 %v172
    %v212 = vunpack.c.l.b16 %v173
    %v213 = vunpack.c.l.b16 %v174
    %v214 = vunpack.c.l.b16 %v175
    %v215 = vunpack.c.l.b16 %v176
    %v216 = vunpack.c.l.b16 %v177
    %v217 = vunpack.c.l.b16 %v178
    %v218 = vunpack.c.l.b16 %v179
    %v219 = vunpack.c.l.b16 %v180
    %v220 = vunpack.c.l.b16 %v181
    %v221 = vunpack.c.l.b16 %v182
    %v222 = vunpack.c.l.b16 %v183
    %v223 = vpack.c.b16 %v208, %v207
    %v224 = vpack.c.b16 %v210, %v209
    %v225 = vpack.c.b16 %v212, %v211
    %v226 = vpack.c.b16 %v214, %v213
    %v227 = vpack.c.b16 %v216, %v215
    %v228 = vpack.c.b16 %v218, %v217
    %v229 = vpack.c.b16 %v220, %v219
    %v230 = vpack.c.b16 %v222, %v221
    %239 = vmatprep.subr.bf16.mxu0 0
    %240 = vmatpush1.bf16.msra.mxu0 %v223
    %241 = vmatprep.subr.bf16.mxu0 0
    %242 = vmatpush1.bf16.msra.mxu0 %v224
    %243 = vmatprep.subr.bf16.mxu0 0
    %244 = vmatpush1.bf16.msra.mxu0 %v225
    %245 = vmatprep.subr.bf16.mxu0 0
    %246 = vmatpush1.bf16.msra.mxu0 %v226
    %247 = vmatprep.subr.bf16.mxu0 0
    %248 = vmatpush1.bf16.msra.mxu0 %v227
    %249 = vmatprep.subr.bf16.mxu0 0
    %250 = vmatpush1.bf16.msra.mxu0 %v228
    %251 = vmatprep.subr.bf16.mxu0 0
    %252 = vmatpush1.bf16.msra.mxu0 %v229
    %253 = vmatprep.subr.bf16.mxu0 0
    %254 = vmatpush1.bf16.msra.mxu0 %v230
    %255 = vmatprep.subr.bf16.mxu0 0
    %256 = vmatpush1.bf16.msra.mxu0 0
    %257 = vmatprep.subr.bf16.mxu0 0
    %258 = vmatpush1.bf16.msra.mxu0 0
    %259 = vmatprep.subr.bf16.mxu0 0
    %260 = vmatpush1.bf16.msra.mxu0 0
    %261 = vmatprep.subr.bf16.mxu0 0
    %262 = vmatpush1.bf16.msra.mxu0 0
    %263 = vmatprep.subr.bf16.mxu0 0
    %264 = vmatpush1.bf16.msra.mxu0 0
    %265 = vmatprep.subr.bf16.mxu0 0
    %266 = vmatpush1.bf16.msra.mxu0 0
    %267 = vmatprep.subr.bf16.mxu0 0
    %268 = vmatpush1.bf16.msra.mxu0 0
    %269 = vmatprep.subr.bf16.mxu0 0
    %270 = vmatpush1.bf16.msra.mxu0 0
    %271 = vmatprep.mubr.bf16.mxu0 0
    %272 = vmatmul.mubr.bf16.gmra.mrb[0].mxu0 %v167
    %v273 = vpop.f32.mrb[0].mxu0
    %v274 = vadd.f32 %v189, %v273
    %v275 = vpop.f32.mrb[0].mxu0
    %v276 = vpop.f32.mrb[0].mxu0
    %v277 = vadd.f32 %v189, %v276
    %v278 = vpop.f32.mrb[0].mxu0
    %279 = vdwg.mxu0
    %280 = vst [vmem:[#allocation7] sm:$0xff] %v274
    %281 = vst [vmem:[#allocation7 + $0x8] sm:$0xff] %v277
    // Predicated region
    $region30: #{_mlp_pallas.1} parent=1 // pred_check
      _
    $region31: #{_mlp_pallas.1} parent=1 // pred_check_branch
      %283 = sbr.rel (0) target = $region33
    $region32: #{_mlp_pallas.1} parent=1 // pred_region
      %s285 = ssub.s32 256, 256
      %286 = vsyncadd [#allocation4], %s285
      %s287 = sshll.u32 [#allocation7], 4
      %s288 = int_to_ptr.vmem [resolvable:$true] %s287
      %293 = dma.vmem_to_hbm [thread:$0]  %s288, 256, %s5, [#allocation4], 128, 128, 8
    $region33: #{_mlp_pallas.1} parent=1 // pred_fallthru
      _
    // Predicated region
    $region34: #{_mlp_pallas.1} parent=1 // pred_check
      _
    $region35: #{_mlp_pallas.1} parent=1 // pred_check_branch
      %295 = sbr.rel (0) target = $region37
    $region36: #{_mlp_pallas.1} parent=1 // pred_region
      %296 = dma.done [#allocation4], 256
    $region37: #{_mlp_pallas.1} parent=1 // pred_fallthru
      _
    %297 = vsyncpa [#allocation3], 1
    %298 = vsyncpa [#allocation6], 1
    %299 = vsyncpa [#allocation4], 1

</llo_original>
